<compile_context>
chip_gen: v6e
topology: v6e:2x2x1
jax: 0.10.0
libtpu: 0.0.40
codegen_flags: <defaults>
</compile_context>

<pallas_src>
import numpy as np
import jax
import jax.numpy as jnp
from jax.experimental import pallas as pl
from jax.experimental.pallas import tpu as pltpu

# ----------------------------------------------------------------------------
# Index tables (from the PyTorch module)
# ----------------------------------------------------------------------------
foot_bone_left_idx   = [0, 3, 7, 10, 4, 5, 15, 16]
foot_bone_right_idx  = [0, 3, 7, 10, 1, 2, 13, 14]
foot_joint_left_idx  = [0, 1, 4, 7, 8, 11, 14, 5, 6]
foot_joint_right_idx = [0, 1, 4, 7, 8, 11, 14, 2, 3]
hand_bone_left_idx   = [0, 3, 7, 10, 8, 9, 17, 18]
hand_bone_right_idx  = [0, 3, 7, 10, 11, 12, 19, 20]
hand_joint_left_idx  = [0, 1, 4, 7, 8, 11, 14, 12, 13]
hand_joint_right_idx = [0, 1, 4, 7, 8, 11, 14, 15, 16]
head_bone_idx        = [0, 3, 7, 10, 6]
head_joint_idx       = [0, 1, 4, 7, 8, 11, 14, 9, 10]

BN_EPS = 1e-5
BATCH_BLOCK = 256  # rows per grid step when the batch is large

# Fused group order == torch.cat((head, hand_left, hand_right, foot_left,
# foot_right), dim=1) order expected by shrink_conv.
FUSED_GROUPS = [
    ("head",       head_joint_idx,        head_bone_idx),
    ("hand_left",  hand_joint_left_idx,   hand_bone_left_idx),
    ("hand_right", hand_joint_right_idx,  hand_bone_right_idx),
    ("foot_left",  foot_joint_left_idx,   foot_bone_left_idx),
    ("foot_right", foot_joint_right_idx,  foot_bone_right_idx),
]


def _round_up(x, m):
    return ((x + m - 1) // m) * m


# ----------------------------------------------------------------------------
# Fused Pallas kernel: whole SingleGroupModel forward in one launch
# ----------------------------------------------------------------------------
def fused_forward_kernel(x_ref, we_ref, be_ref, wl_ref, bl_ref,
                         ws_ref, bs_ref, wo_ref, bo_ref, o_ref):
    """x:(bb,164) -> relu(x@We+be):(bb,160) -> 2 block-diag residual blocks
       -> relu(h@Ws+bs):(bb,32) -> h@Wo+bo:(bb,128 lane-dense)."""

    def lin_relu(x, w, b):
        return jnp.maximum(
            jnp.dot(x, w, preferred_element_type=jnp.float32) + b, 0.0)

    x = x_ref[...]
    # expand_conv + expand_bn + relu (+dropout=id), all 5 groups at once
    h = lin_relu(x, we_ref[...], be_ref[...])
    # residual block 1 (conv0/bn0, conv1/bn1) — block-diagonal over groups
    f = lin_relu(h, wl_ref[0], bl_ref[0])
    h = h + lin_relu(f, wl_ref[1], bl_ref[1])
    # residual block 2 (conv2/bn2, conv3/bn3)
    f = lin_relu(h, wl_ref[2], bl_ref[2])
    h = h + lin_relu(f, wl_ref[3], bl_ref[3])
    # shrink_conv + shrink_bn + relu (+dropout=id)
    s = lin_relu(h, ws_ref[...], bs_ref[...])
    # final biased `shrink` conv, padded to 128 output lanes
    o_ref[...] = (jnp.dot(s, wo_ref[...], preferred_element_type=jnp.float32)
                  + bo_ref[...]).astype(o_ref.dtype)


# ----------------------------------------------------------------------------
# Parameter construction (deterministic, synthetic) + BN fold + block-diag pack
# ----------------------------------------------------------------------------
def _conv_bn_raw(key, cin, cout):
    kw, kg, kb, km, kv = jax.random.split(key, 5)
    return {
        "w": jax.random.normal(kw, (cin, cout), jnp.float32) / jnp.sqrt(float(cin)),
        "gamma": 1.0 + 0.1 * jax.random.normal(kg, (cout,), jnp.float32),
        "beta": 0.1 * jax.random.normal(kb, (cout,), jnp.float32),
        "mean": 0.1 * jax.random.normal(km, (cout,), jnp.float32),
        "var": 0.5 + jax.random.uniform(kv, (cout,), jnp.float32),
    }


def init_raw_params(key, channels, oup_channels=3):
    keys = jax.random.split(key, len(FUSED_GROUPS) + 2)
    raw = {}
    for k, (name, j_idx, b_idx) in zip(keys[:len(FUSED_GROUPS)], FUSED_GROUPS):
        cin = 2 * len(j_idx) + 2 * len(b_idx)
        gk = jax.random.split(k, 5)
        raw[name] = {
            "expand": _conv_bn_raw(gk[0], cin, channels),
            # num_layers=1, N=2  ->  4 conv/bn pairs (two residual blocks)
            "layers": [_conv_bn_raw(gk[i + 1], channels, channels) for i in range(4)],
        }
    raw["shrink_conv"] = _conv_bn_raw(keys[-2], channels * 5, channels)
    kw, kb = jax.random.split(keys[-1], 2)
    out_dim = 17 * oup_channels
    raw["shrink"] = {   # Conv1d(channels, 17*oup_channels, 1) WITH bias
        "w": jax.random.normal(kw, (channels, out_dim), jnp.float32)
             / jnp.sqrt(float(channels)),
        "b": 0.1 * jax.random.normal(kb, (out_dim,), jnp.float32),
    }
    return raw


def _fold_conv_bn(p):
    """Fold eval-mode BN into the conv: y = x @ (W*scale) + shift."""
    scale = np.asarray(p["gamma"]) / np.sqrt(np.asarray(p["var"]) + BN_EPS)
    w = np.asarray(p["w"]) * scale[None, :]
    b = np.asarray(p["beta"]) - np.asarray(p["mean"]) * scale
    return w.astype(np.float32), b.astype(np.float32)


def pack_fused_params(raw):
    C = int(raw["shrink_conv"]["w"].shape[1])
    H = 5 * C
    cins = [2 * len(j) + 2 * len(b) for _, j, b in FUSED_GROUPS]
    offs = np.concatenate([[0], np.cumsum(cins)]).astype(int)
    in_total = int(offs[-1])

    we = np.zeros((in_total, H), np.float32)     # block-diag expand
    be = np.zeros((1, H), np.float32)
    wl = np.zeros((4, H, H), np.float32)         # block-diag residual layers
    bl = np.zeros((4, 1, H), np.float32)

    for g, (name, _, _) in enumerate(FUSED_GROUPS):
        gp = raw[name]
        c0, c1 = g * C, (g + 1) * C
        w, b = _fold_conv_bn(gp["expand"])
        we[offs[g]:offs[g + 1], c0:c1] = w
        be[0, c0:c1] = b
        for l in range(4):
            w, b = _fold_conv_bn(gp["layers"][l])
            wl[l, c0:c1, c0:c1] = w
            bl[l, 0, c0:c1] = b

    ws, bs = _fold_conv_bn(raw["shrink_conv"])   # (H, C), (C,)
    bs = bs.reshape(1, C)

    out_dim = int(raw["shrink"]["w"].shape[1])   # 17 * oup_channels = 51
    out_pad = _round_up(out_dim, 128)            # lane-dense output store
    wo = np.zeros((C, out_pad), np.float32)
    bo = np.zeros((1, out_pad), np.float32)
    wo[:, :out_dim] = np.asarray(raw["shrink"]["w"])
    bo[0, :out_dim] = np.asarray(raw["shrink"]["b"])

    return {
        "we": jnp.asarray(we), "be": jnp.asarray(be),
        "wl": jnp.asarray(wl), "bl": jnp.asarray(bl),
        "ws": jnp.asarray(ws), "bs": jnp.asarray(bs),
        "wo": jnp.asarray(wo), "bo": jnp.asarray(bo),
        "in_total": in_total, "out_dim": out_dim, "out_pad": out_pad,
    }


# ----------------------------------------------------------------------------
# Wrapper around the single pallas_call
# ----------------------------------------------------------------------------
def build_fused_input(pos_2d, bone_angle):
    """Concat each group's [joints, bones] flattened channels, in fused order."""
    B = pos_2d.shape[0]
    parts = []
    for _, j_idx, b_idx in FUSED_GROUPS:
        parts.append(pos_2d[:, j_idx].reshape(B, -1))
        parts.append(bone_angle[:, b_idx].reshape(B, -1))
    return jnp.concatenate(parts, axis=1).astype(jnp.float32)


def single_group_model_forward(pos_2d, bone_angle, packed):
    """Equivalent of SingleGroupModel.forward (eval mode)."""
    B = pos_2d.shape[0]
    x = build_fused_input(pos_2d, bone_angle)            # (B, 164)
    in_total = packed["in_total"]
    out_pad = packed["out_pad"]

    bb = min(BATCH_BLOCK, _round_up(B, 8))                # sublane-aligned tile
    Bp = _round_up(B, bb)
    if Bp != B:
        x = jnp.pad(x, ((0, Bp - B), (0, 0)))

    weights = (packed["we"], packed["be"], packed["wl"], packed["bl"],
               packed["ws"], packed["bs"], packed["wo"], packed["bo"])
    # Whole-array weight blocks with constant index maps -> DMA'd once,
    # resident in VMEM across the batch grid.
    w_specs = [pl.BlockSpec(w.shape, lambda i, nd=w.ndim: (0,) * nd)
               for w in weights]

    out = pl.pallas_call(
        fused_forward_kernel,
        out_shape=jax.ShapeDtypeStruct((Bp, out_pad), jnp.float32),
        grid=(Bp // bb,),
        in_specs=[pl.BlockSpec((bb, in_total), lambda i: (i, 0))] + w_specs,
        out_specs=pl.BlockSpec((bb, out_pad), lambda i: (i, 0)),
        compiler_params=pltpu.CompilerParams(
            dimension_semantics=("parallel",)),
    )(x, *weights)

    return out[:B, :packed["out_dim"]].reshape(B, 17, 3)


# ----------------------------------------------------------------------------
# Pure-JAX reference (un-fused, explicit eval-mode BN) for correctness check
# ----------------------------------------------------------------------------
_HI = jax.lax.Precision.HIGHEST


def _bn_eval(y, p):
    return (y - p["mean"]) * (p["gamma"] / jnp.sqrt(p["var"] + BN_EPS)) + p["beta"]


def _group_ref(pos_sel, bone_sel, gp):
    B = pos_sel.shape[0]
    x = jnp.concatenate([pos_sel.reshape(B, -1), bone_sel.reshape(B, -1)], axis=1)
    h = jax.nn.relu(_bn_eval(jnp.dot(x, gp["expand"]["w"], precision=_HI),
                             gp["expand"]))
    for i in range(2):
        p0, p1 = gp["layers"][2 * i], gp["layers"][2 * i + 1]
        f = jax.nn.relu(_bn_eval(jnp.dot(h, p0["w"], precision=_HI), p0))
        g = jax.nn.relu(_bn_eval(jnp.dot(f, p1["w"], precision=_HI), p1))
        h = h + g
    return h


def reference_forward(pos_2d, bone_angle, raw):
    outs = []
    for name, j_idx, b_idx in FUSED_GROUPS:
        outs.append(_group_ref(pos_2d[:, j_idx], bone_angle[:, b_idx], raw[name]))
    f = jnp.concatenate(outs, axis=1)   # fused order == torch.cat order
    f = jax.nn.relu(_bn_eval(jnp.dot(f, raw["shrink_conv"]["w"], precision=_HI),
                             raw["shrink_conv"]))
    out = jnp.dot(f, raw["shrink"]["w"], precision=_HI) + raw["shrink"]["b"]
    # SingleGroupModel.num_layers == 0 -> extra residual loop is a no-op.
    return out.reshape(-1, 17, 3)


# ----------------------------------------------------------------------------
if __name__ == "__main__":
    B = 2          # batch
    CHANNELS = 32  # hidden channels of each group Model

    key = jax.random.PRNGKey(0)
    k_pos, k_bone, k_par = jax.random.split(key, 3)

    # pos_2d: (B, 17 joints, 2);  bone_angle: (B, 21 bones, 2)
    pos_2d = jax.random.normal(k_pos, (B, 17, 2), jnp.float32)
    bone_angle = jax.random.normal(k_bone, (B, 21, 2), jnp.float32)

    raw = init_raw_params(k_par, CHANNELS, oup_channels=3)
    packed = pack_fused_params(raw)

    @jax.jit
    def run(p2d, ba):
        return single_group_model_forward(p2d, ba, packed)

    out = jax.block_until_ready(run(pos_2d, bone_angle))
    ref = reference_forward(pos_2d, bone_angle, raw)

    assert out.shape == (B, 17, 3), out.shape
    assert bool(jnp.all(jnp.isfinite(out)))
    err = float(jnp.max(jnp.abs(out - ref)))
    assert err < 5e-2, f"max |kernel - reference| = {err}"
    print("KERNEL_OK")
</pallas_src>

<mosaic_0001>
module attributes {stable_mosaic.version = 11 : i64} {
  func.func @fused_forward_kernel(%arg0: i32, %arg1: memref<8x164xf32, #tpu.memory_space<vmem>>, %arg2: memref<164x160xf32, #tpu.memory_space<vmem>>, %arg3: memref<1x160xf32, #tpu.memory_space<vmem>>, %arg4: memref<4x160x160xf32, #tpu.memory_space<vmem>>, %arg5: memref<4x1x160xf32, #tpu.memory_space<vmem>>, %arg6: memref<160x32xf32, #tpu.memory_space<vmem>>, %arg7: memref<1x32xf32, #tpu.memory_space<vmem>>, %arg8: memref<32x128xf32, #tpu.memory_space<vmem>>, %arg9: memref<1x128xf32, #tpu.memory_space<vmem>>, %arg10: memref<8x128xf32, #tpu.memory_space<vmem>>) attributes {dimension_semantics = [#tpu.dimension_semantics<parallel>], iteration_bounds = array<i64: 1>, scalar_prefetch = 0 : i64, scratch_operands = 0 : i64, tpu.core_type = #tpu.core_type<tc>, window_params = [{transform_indices = @transform_0, window_bounds = array<i64: 8, 164>}, {pipeline_mode = #tpu.pipeline_mode<synchronous>, transform_indices = @transform_1, window_bounds = array<i64: 164, 160>}, {pipeline_mode = #tpu.pipeline_mode<synchronous>, transform_indices = @transform_2, window_bounds = array<i64: 1, 160>}, {pipeline_mode = #tpu.pipeline_mode<synchronous>, transform_indices = @transform_3, window_bounds = array<i64: 4, 160, 160>}, {pipeline_mode = #tpu.pipeline_mode<synchronous>, transform_indices = @transform_4, window_bounds = array<i64: 4, 1, 160>}, {pipeline_mode = #tpu.pipeline_mode<synchronous>, transform_indices = @transform_5, window_bounds = array<i64: 160, 32>}, {pipeline_mode = #tpu.pipeline_mode<synchronous>, transform_indices = @transform_6, window_bounds = array<i64: 1, 32>}, {pipeline_mode = #tpu.pipeline_mode<synchronous>, transform_indices = @transform_7, window_bounds = array<i64: 32, 128>}, {pipeline_mode = #tpu.pipeline_mode<synchronous>, transform_indices = @transform_8, window_bounds = array<i64: 1, 128>}, {transform_indices = @transform_9, window_bounds = array<i64: 8, 128>}]} {
    %c0 = arith.constant 0 : index
    %c0_0 = arith.constant 0 : index
    %0 = vector.load %arg1[%c0, %c0_0] : memref<8x164xf32, #tpu.memory_space<vmem>>, vector<8x164xf32>
    %c0_1 = arith.constant 0 : index
    %c0_2 = arith.constant 0 : index
    %1 = vector.load %arg2[%c0_1, %c0_2] : memref<164x160xf32, #tpu.memory_space<vmem>>, vector<164x160xf32>
    %c0_3 = arith.constant 0 : index
    %c0_4 = arith.constant 0 : index
    %2 = vector.load %arg3[%c0_3, %c0_4] : memref<1x160xf32, #tpu.memory_space<vmem>>, vector<1x160xf32>
    %cst = arith.constant dense<0.000000e+00> : vector<8x160xf32>
    %3 = tpu.matmul %0, %1, %cst {dimension_numbers = #tpu.dot_dimension_numbers<[1], [0], [0], [1], [0, 0, 1, 1], [], []>} : vector<8x164xf32>, vector<164x160xf32>, vector<8x160xf32> -> vector<8x160xf32>
    %4 = vector.broadcast %2 : vector<1x160xf32> to vector<8x160xf32>
    %5 = arith.addf %3, %4 : vector<8x160xf32>
    %cst_5 = arith.constant 0.000000e+00 : f32
    %6 = vector.broadcast %cst_5 : f32 to vector<8x160xf32>
    %7 = arith.maximumf %5, %6 : vector<8x160xf32>
    %c0_6 = arith.constant 0 : index
    %c0_7 = arith.constant 0 : index
    %c0_8 = arith.constant 0 : index
    %8 = vector.load %arg4[%c0_6, %c0_7, %c0_8] : memref<4x160x160xf32, #tpu.memory_space<vmem>>, vector<1x160x160xf32>
    %9 = vector.shape_cast %8 : vector<1x160x160xf32> to vector<160x160xf32>
    %c0_9 = arith.constant 0 : index
    %c0_10 = arith.constant 0 : index
    %c0_11 = arith.constant 0 : index
    %10 = vector.load %arg5[%c0_9, %c0_10, %c0_11] : memref<4x1x160xf32, #tpu.memory_space<vmem>>, vector<1x1x160xf32>
    %11 = vector.shape_cast %10 : vector<1x1x160xf32> to vector<1x160xf32>
    %cst_12 = arith.constant dense<0.000000e+00> : vector<8x160xf32>
    %12 = tpu.matmul %7, %9, %cst_12 {dimension_numbers = #tpu.dot_dimension_numbers<[1], [0], [0], [1], [0, 0, 1, 1], [], []>} : vector<8x160xf32>, vector<160x160xf32>, vector<8x160xf32> -> vector<8x160xf32>
    %13 = vector.broadcast %11 : vector<1x160xf32> to vector<8x160xf32>
    %14 = arith.addf %12, %13 : vector<8x160xf32>
    %cst_13 = arith.constant 0.000000e+00 : f32
    %15 = vector.broadcast %cst_13 : f32 to vector<8x160xf32>
    %16 = arith.maximumf %14, %15 : vector<8x160xf32>
    %c1 = arith.constant 1 : index
    %c0_14 = arith.constant 0 : index
    %c0_15 = arith.constant 0 : index
    %17 = vector.load %arg4[%c1, %c0_14, %c0_15] : memref<4x160x160xf32, #tpu.memory_space<vmem>>, vector<1x160x160xf32>
    %18 = vector.shape_cast %17 : vector<1x160x160xf32> to vector<160x160xf32>
    %c1_16 = arith.constant 1 : index
    %c0_17 = arith.constant 0 : index
    %c0_18 = arith.constant 0 : index
    %19 = vector.load %arg5[%c1_16, %c0_17, %c0_18] : memref<4x1x160xf32, #tpu.memory_space<vmem>>, vector<1x1x160xf32>
    %20 = vector.shape_cast %19 : vector<1x1x160xf32> to vector<1x160xf32>
    %cst_19 = arith.constant dense<0.000000e+00> : vector<8x160xf32>
    %21 = tpu.matmul %16, %18, %cst_19 {dimension_numbers = #tpu.dot_dimension_numbers<[1], [0], [0], [1], [0, 0, 1, 1], [], []>} : vector<8x160xf32>, vector<160x160xf32>, vector<8x160xf32> -> vector<8x160xf32>
    %22 = vector.broadcast %20 : vector<1x160xf32> to vector<8x160xf32>
    %23 = arith.addf %21, %22 : vector<8x160xf32>
    %cst_20 = arith.constant 0.000000e+00 : f32
    %24 = vector.broadcast %cst_20 : f32 to vector<8x160xf32>
    %25 = arith.maximumf %23, %24 : vector<8x160xf32>
    %26 = arith.addf %7, %25 : vector<8x160xf32>
    %c2 = arith.constant 2 : index
    %c0_21 = arith.constant 0 : index
    %c0_22 = arith.constant 0 : index
    %27 = vector.load %arg4[%c2, %c0_21, %c0_22] : memref<4x160x160xf32, #tpu.memory_space<vmem>>, vector<1x160x160xf32>
    %28 = vector.shape_cast %27 : vector<1x160x160xf32> to vector<160x160xf32>
    %c2_23 = arith.constant 2 : index
    %c0_24 = arith.constant 0 : index
    %c0_25 = arith.constant 0 : index
    %29 = vector.load %arg5[%c2_23, %c0_24, %c0_25] : memref<4x1x160xf32, #tpu.memory_space<vmem>>, vector<1x1x160xf32>
    %30 = vector.shape_cast %29 : vector<1x1x160xf32> to vector<1x160xf32>
    %cst_26 = arith.constant dense<0.000000e+00> : vector<8x160xf32>
    %31 = tpu.matmul %26, %28, %cst_26 {dimension_numbers = #tpu.dot_dimension_numbers<[1], [0], [0], [1], [0, 0, 1, 1], [], []>} : vector<8x160xf32>, vector<160x160xf32>, vector<8x160xf32> -> vector<8x160xf32>
    %32 = vector.broadcast %30 : vector<1x160xf32> to vector<8x160xf32>
    %33 = arith.addf %31, %32 : vector<8x160xf32>
    %cst_27 = arith.constant 0.000000e+00 : f32
    %34 = vector.broadcast %cst_27 : f32 to vector<8x160xf32>
    %35 = arith.maximumf %33, %34 : vector<8x160xf32>
    %c3 = arith.constant 3 : index
    %c0_28 = arith.constant 0 : index
    %c0_29 = arith.constant 0 : index
    %36 = vector.load %arg4[%c3, %c0_28, %c0_29] : memref<4x160x160xf32, #tpu.memory_space<vmem>>, vector<1x160x160xf32>
    %37 = vector.shape_cast %36 : vector<1x160x160xf32> to vector<160x160xf32>
    %c3_30 = arith.constant 3 : index
    %c0_31 = arith.constant 0 : index
    %c0_32 = arith.constant 0 : index
    %38 = vector.load %arg5[%c3_30, %c0_31, %c0_32] : memref<4x1x160xf32, #tpu.memory_space<vmem>>, vector<1x1x160xf32>
    %39 = vector.shape_cast %38 : vector<1x1x160xf32> to vector<1x160xf32>
    %cst_33 = arith.constant dense<0.000000e+00> : vector<8x160xf32>
    %40 = tpu.matmul %35, %37, %cst_33 {dimension_numbers = #tpu.dot_dimension_numbers<[1], [0], [0], [1], [0, 0, 1, 1], [], []>} : vector<8x160xf32>, vector<160x160xf32>, vector<8x160xf32> -> vector<8x160xf32>
    %41 = vector.broadcast %39 : vector<1x160xf32> to vector<8x160xf32>
    %42 = arith.addf %40, %41 : vector<8x160xf32>
    %cst_34 = arith.constant 0.000000e+00 : f32
    %43 = vector.broadcast %cst_34 : f32 to vector<8x160xf32>
    %44 = arith.maximumf %42, %43 : vector<8x160xf32>
    %45 = arith.addf %26, %44 : vector<8x160xf32>
    %c0_35 = arith.constant 0 : index
    %c0_36 = arith.constant 0 : index
    %46 = vector.load %arg6[%c0_35, %c0_36] : memref<160x32xf32, #tpu.memory_space<vmem>>, vector<160x32xf32>
    %c0_37 = arith.constant 0 : index
    %c0_38 = arith.constant 0 : index
    %47 = vector.load %arg7[%c0_37, %c0_38] : memref<1x32xf32, #tpu.memory_space<vmem>>, vector<1x32xf32>
    %cst_39 = arith.constant dense<0.000000e+00> : vector<8x32xf32>
    %48 = tpu.matmul %45, %46, %cst_39 {dimension_numbers = #tpu.dot_dimension_numbers<[1], [0], [0], [1], [0, 0, 1, 1], [], []>} : vector<8x160xf32>, vector<160x32xf32>, vector<8x32xf32> -> vector<8x32xf32>
    %49 = vector.broadcast %47 : vector<1x32xf32> to vector<8x32xf32>
    %50 = arith.addf %48, %49 : vector<8x32xf32>
    %cst_40 = arith.constant 0.000000e+00 : f32
    %51 = vector.broadcast %cst_40 : f32 to vector<8x32xf32>
    %52 = arith.maximumf %50, %51 : vector<8x32xf32>
    %c0_41 = arith.constant 0 : index
    %c0_42 = arith.constant 0 : index
    %53 = vector.load %arg8[%c0_41, %c0_42] : memref<32x128xf32, #tpu.memory_space<vmem>>, vector<32x128xf32>
    %cst_43 = arith.constant dense<0.000000e+00> : vector<8x128xf32>
    %54 = tpu.matmul %52, %53, %cst_43 {dimension_numbers = #tpu.dot_dimension_numbers<[1], [0], [0], [1], [0, 0, 1, 1], [], []>} : vector<8x32xf32>, vector<32x128xf32>, vector<8x128xf32> -> vector<8x128xf32>
    %c0_44 = arith.constant 0 : index
    %c0_45 = arith.constant 0 : index
    %55 = vector.load %arg9[%c0_44, %c0_45] : memref<1x128xf32, #tpu.memory_space<vmem>>, vector<1x128xf32>
    %56 = vector.broadcast %55 : vector<1x128xf32> to vector<8x128xf32>
    %57 = arith.addf %54, %56 : vector<8x128xf32>
    %c0_46 = arith.constant 0 : index
    %c0_47 = arith.constant 0 : index
    %58 = vector.load %arg10[%c0_46, %c0_47] : memref<8x128xf32, #tpu.memory_space<vmem>>, vector<8x128xf32>
    tpu.vector_store %arg10[%c0_46, %c0_47], %57 {strides = array<i32>} : memref<8x128xf32, #tpu.memory_space<vmem>>, vector<8x128xf32>,
    return
  }
  func.func @transform_0(%arg0: i32) -> (i32, i32) {
    %c0_i32 = arith.constant 0 : i32
    %c0_i32_0 = arith.constant 0 : i32
    return %arg0, %c0_i32 : i32, i32
  }
  func.func @transform_1(%arg0: i32) -> (i32, i32) {
    %c0_i32 = arith.constant 0 : i32
    %c0_i32_0 = arith.constant 0 : i32
    %c0_i32_1 = arith.constant 0 : i32
    return %c0_i32, %c0_i32_0 : i32, i32
  }
  func.func @transform_2(%arg0: i32) -> (i32, i32) {
    %c0_i32 = arith.constant 0 : i32
    %c0_i32_0 = arith.constant 0 : i32
    %c0_i32_1 = arith.constant 0 : i32
    return %c0_i32, %c0_i32_0 : i32, i32
  }
  func.func @transform_3(%arg0: i32) -> (i32, i32, i32) {
    %c0_i32 = arith.constant 0 : i32
    %c0_i32_0 = arith.constant 0 : i32
    %c0_i32_1 = arith.constant 0 : i32
    %c0_i32_2 = arith.constant 0 : i32
    return %c0_i32, %c0_i32_0, %c0_i32_1 : i32, i32, i32
  }
  func.func @transform_4(%arg0: i32) -> (i32, i32, i32) {
    %c0_i32 = arith.constant 0 : i32
    %c0_i32_0 = arith.constant 0 : i32
    %c0_i32_1 = arith.constant 0 : i32
    %c0_i32_2 = arith.constant 0 : i32
    return %c0_i32, %c0_i32_0, %c0_i32_1 : i32, i32, i32
  }
  func.func @transform_5(%arg0: i32) -> (i32, i32) {
    %c0_i32 = arith.constant 0 : i32
    %c0_i32_0 = arith.constant 0 : i32
    %c0_i32_1 = arith.constant 0 : i32
    return %c0_i32, %c0_i32_0 : i32, i32
  }
  func.func @transform_6(%arg0: i32) -> (i32, i32) {
    %c0_i32 = arith.constant 0 : i32
    %c0_i32_0 = arith.constant 0 : i32
    %c0_i32_1 = arith.constant 0 : i32
    return %c0_i32, %c0_i32_0 : i32, i32
  }
  func.func @transform_7(%arg0: i32) -> (i32, i32) {
    %c0_i32 = arith.constant 0 : i32
    %c0_i32_0 = arith.constant 0 : i32
    %c0_i32_1 = arith.constant 0 : i32
    return %c0_i32, %c0_i32_0 : i32, i32
  }
  func.func @transform_8(%arg0: i32) -> (i32, i32) {
    %c0_i32 = arith.constant 0 : i32
    %c0_i32_0 = arith.constant 0 : i32
    %c0_i32_1 = arith.constant 0 : i32
    return %c0_i32, %c0_i32_0 : i32, i32
  }
  func.func @transform_9(%arg0: i32) -> (i32, i32) {
    %c0_i32 = arith.constant 0 : i32
    %c0_i32_0 = arith.constant 0 : i32
    return %arg0, %c0_i32 : i32, i32
  }
}

</mosaic_0001>

<llo_original>
// kernel: run.1
$region0: #{run.1}
  #allocation0 [shape = 'u32[]', space=smem, size = 0x4, offset = 0x4, fixed_abs, tag = 'smem constant byte address 0x4 - core index']
  #allocation1 [shape = 'u32[144,128]{1,0:T(1,128)}', space=vmem, size = 0x12000, scoped, tag = 'internal scratch']
  %s0 = inlined_call_operand.vmem [shape: f32[8,164], index: 0, kind: input, shape index: {}]
  %s1 = inlined_call_operand.hbm [shape: f32[164,160], index: 1, kind: input, shape index: {}]
  %s2 = inlined_call_operand.vmem [shape: f32[1,160], index: 2, kind: input, shape index: {}]
  %s3 = inlined_call_operand.vmem [shape: f32[4,160,160], index: 3, kind: input, shape index: {}]
  %s4 = inlined_call_operand.vmem [shape: f32[4,1,160], index: 4, kind: input, shape index: {}]
  %s5 = inlined_call_operand.hbm [shape: f32[160,32], index: 5, kind: input, shape index: {}]
  %s6 = inlined_call_operand.vmem [shape: f32[1,32], index: 6, kind: input, shape index: {}]
  %s7 = inlined_call_operand.vmem [shape: f32[32,128], index: 7, kind: input, shape index: {}]
  %s8 = inlined_call_operand.vmem [shape: f32[1,128], index: 8, kind: input, shape index: {}]
  %s9 = inlined_call_operand.vmem [shape: f32[8,128], index: 9, kind: output, shape index: {}]
  %s10 = sld [smem:[#allocation0]]
  $region54: #{run.1} parent=0
    _
  %s12 = ssub.s32 1, %s10
  %s13 = scalar_select 0, %s12, %s10
  $region1: #{run.1} parent=0
    #allocation2 [shape = 'u8[172032]{0}', space=vmem, size = 0x2a000, scoped, tag = 'input window, operand 1, single buffered']
    #allocation3 [shape = 's32[1]{0}', space=sflag, size = 0x4, scoped, tag = 'scoped memory for run.1']
    #allocation4 [shape = 'u8[81920]{0}', space=vmem, size = 0x14000, scoped, tag = 'input window, operand 5, single buffered']
    #allocation5 [shape = 's32[1]{0}', space=sflag, size = 0x4, scoped, tag = 'scoped memory for run.1']
    %14 = vsyncpa [#allocation3], 0
    %15 = vsyncpa [#allocation5], 0
    // Predicated region
    $region2: #{run.1} parent=1 // pred_check
      _
    $region3: #{run.1} parent=1 // pred_check_branch
      %17 = sbr.rel (0) target = $region5
    $region4: #{run.1} parent=1 // pred_region
      _
    $region5: #{run.1} parent=1 // pred_fallthru
      _
    // Predicated region
    $region6: #{run.1} parent=1 // pred_check
      _
    $region7: #{run.1} parent=1 // pred_check_branch
      %19 = sbr.rel (0) target = $region9
    $region8: #{run.1} parent=1 // pred_region
      %s21 = ssub.s32 5376, 5376
      %22 = vsyncadd [#allocation3], %s21
      %s23 = sshll.u32 [#allocation2], 4
      %s24 = int_to_ptr.vmem [resolvable:$true] %s23
      %29 = dma.hbm_to_vmem [thread:$0]  %s1, 5376, %s24, [#allocation3], 256, 256, 16
    $region9: #{run.1} parent=1 // pred_fallthru
      _
    // Predicated region
    $region10: #{run.1} parent=1 // pred_check
      _
    $region11: #{run.1} parent=1 // pred_check_branch
      %31 = sbr.rel (0) target = $region13
    $region12: #{run.1} parent=1 // pred_region
      _
    $region13: #{run.1} parent=1 // pred_fallthru
      _
    // Predicated region
    $region14: #{run.1} parent=1 // pred_check
      _
    $region15: #{run.1} parent=1 // pred_check_branch
      %33 = sbr.rel (0) target = $region17
    $region16: #{run.1} parent=1 // pred_region
      _
    $region17: #{run.1} parent=1 // pred_fallthru
      _
    // Predicated region
    $region18: #{run.1} parent=1 // pred_check
      _
    $region19: #{run.1} parent=1 // pred_check_branch
      %35 = sbr.rel (0) target = $region21
    $region20: #{run.1} parent=1 // pred_region
      _
    $region21: #{run.1} parent=1 // pred_fallthru
      _
    // Predicated region
    $region22: #{run.1} parent=1 // pred_check
      _
    $region23: #{run.1} parent=1 // pred_check_branch
      %37 = sbr.rel (0) target = $region25
    $region24: #{run.1} parent=1 // pred_region
      %s39 = ssub.s32 2560, 2560
      %40 = vsyncadd [#allocation5], %s39
      %s41 = sshll.u32 [#allocation4], 4
      %s42 = int_to_ptr.vmem [resolvable:$true] %s41
      %47 = dma.hbm_to_vmem [thread:$0]  %s5, 2560, %s42, [#allocation5], 128, 128, 8
    $region25: #{run.1} parent=1 // pred_fallthru
      _
    // Predicated region
    $region26: #{run.1} parent=1 // pred_check
      _
    $region27: #{run.1} parent=1 // pred_check_branch
      %49 = sbr.rel (0) target = $region29
    $region28: #{run.1} parent=1 // pred_region
      _
    $region29: #{run.1} parent=1 // pred_fallthru
      _
    // Predicated region
    $region30: #{run.1} parent=1 // pred_check
      _
    $region31: #{run.1} parent=1 // pred_check_branch
      %51 = sbr.rel (0) target = $region33
    $region32: #{run.1} parent=1 // pred_region
      _
    $region33: #{run.1} parent=1 // pred_fallthru
      _
    // Predicated region
    $region34: #{run.1} parent=1 // pred_check
      _
    $region35: #{run.1} parent=1 // pred_check_branch
      %53 = sbr.rel (0) target = $region37
    $region36: #{run.1} parent=1 // pred_region
      _
    $region37: #{run.1} parent=1 // pred_fallthru
      _
    // Predicated region
    $region38: #{run.1} parent=1 // pred_check
      _
    $region39: #{run.1} parent=1 // pred_check_branch
      %55 = sbr.rel (0) target = $region41
    $region40: #{run.1} parent=1 // pred_region
      %56 = dma.done [#allocation3], 5376
    $region41: #{run.1} parent=1 // pred_fallthru
      _
    // Predicated region
    $region42: #{run.1} parent=1 // pred_check
      _
    $region43: #{run.1} parent=1 // pred_check_branch
      %58 = sbr.rel (0) target = $region45
    $region44: #{run.1} parent=1 // pred_region
      %59 = dma.done [#allocation5], 2560
    $region45: #{run.1} parent=1 // pred_fallthru
      _
    %v60 = vld [vmem:[%s0] sm:$0xff]
    %v61 = vld [vmem:[%s0 + $0x8] sm:$0xff]
    %v62 = vld [vmem:[#allocation2] sm:$0xff]
    %v63 = vld [vmem:[#allocation2 + $0x8] sm:$0xff]
    %v64 = vld [vmem:[#allocation2 + $0x10] sm:$0xff]
    %v65 = vld [vmem:[#allocation2 + $0x18] sm:$0xff]
    %v66 = vld [vmem:[#allocation2 + $0x20] sm:$0xff]
    %v67 = vld [vmem:[#allocation2 + $0x28] sm:$0xff]
    %v68 = vld [vmem:[#allocation2 + $0x30] sm:$0xff]
    %v69 = vld [vmem:[#allocation2 + $0x38] sm:$0xff]
    %v70 = vld [vmem:[#allocation2 + $0x40] sm:$0xff]
    %v71 = vld [vmem:[#allocation2 + $0x48] sm:$0xff]
    %v72 = vld [vmem:[#allocation2 + $0x50] sm:$0xff]
    %v73 = vld [vmem:[#allocation2 + $0x58] sm:$0xff]
    %v74 = vld [vmem:[#allocation2 + $0x60] sm:$0xff]
    %v75 = vld [vmem:[#allocation2 + $0x68] sm:$0xff]
    %v76 = vld [vmem:[#allocation2 + $0x70] sm:$0xff]
    %v77 = vld [vmem:[#allocation2 + $0x78] sm:$0xff]
    %v78 = vld [vmem:[#allocation2 + $0x80] sm:$0xff]
    %v79 = vld [vmem:[#allocation2 + $0x88] sm:$0xff]
    %v80 = vld [vmem:[#allocation2 + $0x90] sm:$0xff]
    %v81 = vld [vmem:[#allocation2 + $0x98] sm:$0xff]
    %v82 = vld [vmem:[#allocation2 + $0xa0] sm:$0xff]
    %v83 = vld [vmem:[#allocation2 + $0xa8] sm:$0xff]
    %v84 = vld [vmem:[#allocation2 + $0xb0] sm:$0xff]
    %v85 = vld [vmem:[#allocation2 + $0xb8] sm:$0xff]
    %v86 = vld [vmem:[#allocation2 + $0xc0] sm:$0xff]
    %v87 = vld [vmem:[#allocation2 + $0xc8] sm:$0xff]
    %v88 = vld [vmem:[#allocation2 + $0xd0] sm:$0xff]
    %v89 = vld [vmem:[#allocation2 + $0xd8] sm:$0xff]
    %v90 = vld [vmem:[#allocation2 + $0xe0] sm:$0xff]
    %v91 = vld [vmem:[#allocation2 + $0xe8] sm:$0xff]
    %v92 = vld [vmem:[#allocation2 + $0xf0] sm:$0xff]
    %v93 = vld [vmem:[#allocation2 + $0xf8] sm:$0xff]
    %v94 = vld [vmem:[#allocation2 + $0x100] sm:$0xff]
    %v95 = vld [vmem:[#allocation2 + $0x108] sm:$0xff]
    %v96 = vld [vmem:[#allocation2 + $0x110] sm:$0xff]
    %v97 = vld [vmem:[#allocation2 + $0x118] sm:$0xff]
    %v98 = vld [vmem:[#allocation2 + $0x120] sm:$0xff]
    %v99 = vld [vmem:[#allocation2 + $0x128] sm:$0xff]
    %v100 = vld [vmem:[#allocation2 + $0x130] sm:$0xff]
    %v101 = vld [vmem:[#allocation2 + $0x138] sm:$0xff]
    %v102 = vld [vmem:[#allocation2 + $0x140] sm:$0xf]
    %v103 = vld [vmem:[#allocation2 + $0x148] sm:$0xf]
    %v104 = vld [vmem:[%s2] sm:$0x3]
    %v106 = vlaneseq
    %v107 = vshrl.u32 %v106, 7
    %v108 = vsub.s32 0, %v107
    %v109 = vrot.slane %v104, %v108
    %v110 = vlaneseq
    %v111 = vshrl.u32 %v110, 7
    %v112 = vsub.s32 1, %v111
    %v113 = vrot.slane %v104, %v112
    %vm116 = vcmask 293888
    %v118 = vsel %vm116, %v61, 0
    %vm120 = vcmask 1043456
    %v122 = vsel %vm120, %v102, 0
    %v125 = vsel %vm120, %v103, 0
    %127 = vmatprep.subr.mxu0 %v93
    %128 = vmatpush1.msra.mxu0 %v92
    %129 = vmatprep.subr.mxu0 %v91
    %130 = vmatpush1.msra.mxu0 %v90
    %131 = vmatprep.subr.mxu0 %v89
    %132 = vmatpush1.msra.mxu0 %v88
    %133 = vmatprep.subr.mxu0 %v87
    %134 = vmatpush1.msra.mxu0 %v86
    %135 = vmatprep.subr.mxu0 %v85
    %136 = vmatpush1.msra.mxu0 %v84
    %137 = vmatprep.subr.mxu0 %v83
    %138 = vmatpush1.msra.mxu0 %v82
    %139 = vmatprep.subr.mxu0 %v81
    %140 = vmatpush1.msra.mxu0 %v80
    %141 = vmatprep.subr.mxu0 %v79
    %142 = vmatpush1.msra.mxu0 %v78
    %143 = vmatprep.subr.mxu0 %v77
    %144 = vmatpush1.msra.mxu0 %v76
    %145 = vmatprep.subr.mxu0 %v75
    %146 = vmatpush1.msra.mxu0 %v74
    %147 = vmatprep.subr.mxu0 %v73
    %148 = vmatpush1.msra.mxu0 %v72
    %149 = vmatprep.subr.mxu0 %v71
    %150 = vmatpush1.msra.mxu0 %v70
    %151 = vmatprep.subr.mxu0 %v69
    %152 = vmatpush1.msra.mxu0 %v68
    %153 = vmatprep.subr.mxu0 %v67
    %154 = vmatpush1.msra.mxu0 %v66
    %155 = vmatprep.subr.mxu0 %v65
    %156 = vmatpush1.msra.mxu0 %v64
    %157 = vmatprep.subr.mxu0 %v63
    %158 = vmatpush1.msra.mxu0 %v62
    %159 = vmatprep.subr.mxu0 0.0
    %160 = vmatpush2.msra.mxu0 0.0
    %161 = vmatprep.subr.mxu0 0.0
    %162 = vmatpush2.msra.mxu0 0.0
    %163 = vmatprep.subr.mxu0 0.0
    %164 = vmatpush2.msra.mxu0 0.0
    %165 = vmatprep.subr.mxu0 0.0
    %166 = vmatpush2.msra.mxu0 0.0
    %167 = vmatprep.subr.mxu0 0.0
    %168 = vmatpush2.msra.mxu0 0.0
    %169 = vmatprep.subr.mxu0 0.0
    %170 = vmatpush2.msra.mxu0 0.0
    %171 = vmatprep.subr.mxu0 0.0
    %172 = vmatpush2.msra.mxu0 0.0
    %173 = vmatprep.subr.mxu0 0.0
    %174 = vmatpush2.msra.mxu0 0.0
    %175 = vmatprep.subr.mxu0 0.0
    %176 = vmatpush2.msra.mxu0 0.0
    %177 = vmatprep.subr.mxu0 0.0
    %178 = vmatpush2.msra.mxu0 0.0
    %179 = vmatprep.subr.mxu0 0.0
    %180 = vmatpush2.msra.mxu0 0.0
    %181 = vmatprep.subr.mxu0 %v125
    %182 = vmatpush2.msra.mxu0 %v122
    %183 = vmatprep.subr.mxu0 %v101
    %184 = vmatpush2.msra.mxu0 %v100
    %185 = vmatprep.subr.mxu0 %v99
    %186 = vmatpush2.msra.mxu0 %v98
    %187 = vmatprep.subr.mxu0 %v97
    %188 = vmatpush2.msra.mxu0 %v96
    %189 = vmatprep.subr.mxu0 %v95
    %190 = vmatpush2.msra.mxu0 %v94
    %191 = vmatprep.mubr.f32.mxu0 %v118
    %192 = vmatmul.mubr.f32.gmra.mxu0 %v60
    %v193 = vpop.f32.mrf.mxu0
    %v194 = vadd.f32 %v109, %v193
    %v195 = vpop.f32.mrf.mxu0
    %v196 = vadd.f32 %v113, %v195
    %197 = vdwg.mxu0
    %v198 = vmax.f32 %v194, 0.0
    %v199 = vmax.f32 %v196, 0.0
    %v200 = vld [vmem:[%s3] sm:$0xff]
    %v201 = vld [vmem:[%s3 + $0x8] sm:$0xff]
    %v202 = vld [vmem:[%s3 + $0x10] sm:$0xff]
    %v203 = vld [vmem:[%s3 + $0x18] sm:$0xff]
    %v204 = vld [vmem:[%s3 + $0x20] sm:$0xff]
    %v205 = vld [vmem:[%s3 + $0x28] sm:$0xff]
    %v206 = vld [vmem:[%s3 + $0x30] sm:$0xff]
    %v207 = vld [vmem:[%s3 + $0x38] sm:$0xff]
    %v208 = vld [vmem:[%s3 + $0x40] sm:$0xff]
    %v209 = vld [vmem:[%s3 + $0x48] sm:$0xff]
    %v210 = vld [vmem:[%s3 + $0x50] sm:$0xff]
    %v211 = vld [vmem:[%s3 + $0x58] sm:$0xff]
    %v212 = vld [vmem:[%s3 + $0x60] sm:$0xff]
    %v213 = vld [vmem:[%s3 + $0x68] sm:$0xff]
    %v214 = vld [vmem:[%s3 + $0x70] sm:$0xff]
    %v215 = vld [vmem:[%s3 + $0x78] sm:$0xff]
    %v216 = vld [vmem:[%s3 + $0x80] sm:$0xff]
    %v217 = vld [vmem:[%s3 + $0x88] sm:$0xff]
    %v218 = vld [vmem:[%s3 + $0x90] sm:$0xff]
    %v219 = vld [vmem:[%s3 + $0x98] sm:$0xff]
    %v220 = vld [vmem:[%s3 + $0xa0] sm:$0xff]
    %v221 = vld [vmem:[%s3 + $0xa8] sm:$0xff]
    %v222 = vld [vmem:[%s3 + $0xb0] sm:$0xff]
    %v223 = vld [vmem:[%s3 + $0xb8] sm:$0xff]
    %v224 = vld [vmem:[%s3 + $0xc0] sm:$0xff]
    %v225 = vld [vmem:[%s3 + $0xc8] sm:$0xff]
    %v226 = vld [vmem:[%s3 + $0xd0] sm:$0xff]
    %v227 = vld [vmem:[%s3 + $0xd8] sm:$0xff]
    %v228 = vld [vmem:[%s3 + $0xe0] sm:$0xff]
    %v229 = vld [vmem:[%s3 + $0xe8] sm:$0xff]
    %v230 = vld [vmem:[%s3 + $0xf0] sm:$0xff]
    %v231 = vld [vmem:[%s3 + $0xf8] sm:$0xff]
    %v232 = vld [vmem:[%s3 + $0x100] sm:$0xff]
    %v233 = vld [vmem:[%s3 + $0x108] sm:$0xff]
    %v234 = vld [vmem:[%s3 + $0x110] sm:$0xff]
    %v235 = vld [vmem:[%s3 + $0x118] sm:$0xff]
    %v236 = vld [vmem:[%s3 + $0x120] sm:$0xff]
    %v237 = vld [vmem:[%s3 + $0x128] sm:$0xff]
    %v238 = vld [vmem:[%s3 + $0x130] sm:$0xff]
    %v239 = vld [vmem:[%s3 + $0x138] sm:$0xff]
    %v240 = vld [vmem:[%s4] sm:$0x3]
    %v242 = vlaneseq
    %v243 = vshrl.u32 %v242, 7
    %v244 = vsub.s32 0, %v243
    %v245 = vrot.slane %v240, %v244
    %v246 = vlaneseq
    %v247 = vshrl.u32 %v246, 7
    %v248 = vsub.s32 1, %v247
    %v249 = vrot.slane %v240, %v248
    %vm252 = vcmask 261120
    %v254 = vsel %vm252, %v199, 0
    %256 = vmatprep.subr.mxu0 %v231
    %257 = vmatpush1.msra.mxu0 %v230
    %258 = vmatprep.subr.mxu0 %v229
    %259 = vmatpush1.msra.mxu0 %v228
    %260 = vmatprep.subr.mxu0 %v227
    %261 = vmatpush1.msra.mxu0 %v226
    %262 = vmatprep.subr.mxu0 %v225
    %263 = vmatpush1.msra.mxu0 %v224
    %264 = vmatprep.subr.mxu0 %v223
    %265 = vmatpush1.msra.mxu0 %v222
    %266 = vmatprep.subr.mxu0 %v221
    %267 = vmatpush1.msra.mxu0 %v220
    %268 = vmatprep.subr.mxu0 %v219
    %269 = vmatpush1.msra.mxu0 %v218
    %270 = vmatprep.subr.mxu0 %v217
    %271 = vmatpush1.msra.mxu0 %v216
    %272 = vmatprep.subr.mxu0 %v215
    %273 = vmatpush1.msra.mxu0 %v214
    %274 = vmatprep.subr.mxu0 %v213
    %275 = vmatpush1.msra.mxu0 %v212
    %276 = vmatprep.subr.mxu0 %v211
    %277 = vmatpush1.msra.mxu0 %v210
    %278 = vmatprep.subr.mxu0 %v209
    %279 = vmatpush1.msra.mxu0 %v208
    %280 = vmatprep.subr.mxu0 %v207
    %281 = vmatpush1.msra.mxu0 %v206
    %282 = vmatprep.subr.mxu0 %v205
    %283 = vmatpush1.msra.mxu0 %v204
    %284 = vmatprep.subr.mxu0 %v203
    %285 = vmatpush1.msra.mxu0 %v202
    %286 = vmatprep.subr.mxu0 %v201
    %287 = vmatpush1.msra.mxu0 %v200
    %288 = vmatprep.subr.mxu0 0.0
    %289 = vmatpush2.msra.mxu0 0.0
    %290 = vmatprep.subr.mxu0 0.0
    %291 = vmatpush2.msra.mxu0 0.0
    %292 = vmatprep.subr.mxu0 0.0
    %293 = vmatpush2.msra.mxu0 0.0
    %294 = vmatprep.subr.mxu0 0.0
    %295 = vmatpush2.msra.mxu0 0.0
    %296 = vmatprep.subr.mxu0 0.0
    %297 = vmatpush2.msra.mxu0 0.0
    %298 = vmatprep.subr.mxu0 0.0
    %299 = vmatpush2.msra.mxu0 0.0
    %300 = vmatprep.subr.mxu0 0.0
    %301 = vmatpush2.msra.mxu0 0.0
    %302 = vmatprep.subr.mxu0 0.0
    %303 = vmatpush2.msra.mxu0 0.0
    %304 = vmatprep.subr.mxu0 0.0
    %305 = vmatpush2.msra.mxu0 0.0
    %306 = vmatprep.subr.mxu0 0.0
    %307 = vmatpush2.msra.mxu0 0.0
    %308 = vmatprep.subr.mxu0 0.0
    %309 = vmatpush2.msra.mxu0 0.0
    %310 = vmatprep.subr.mxu0 0.0
    %311 = vmatpush2.msra.mxu0 0.0
    %312 = vmatprep.subr.mxu0 %v239
    %313 = vmatpush2.msra.mxu0 %v238
    %314 = vmatprep.subr.mxu0 %v237
    %315 = vmatpush2.msra.mxu0 %v236
    %316 = vmatprep.subr.mxu0 %v235
    %317 = vmatpush2.msra.mxu0 %v234
    %318 = vmatprep.subr.mxu0 %v233
    %319 = vmatpush2.msra.mxu0 %v232
    %320 = vmatprep.mubr.f32.mxu0 %v254
    %321 = vmatmul.mubr.f32.gmra.mxu0 %v198
    %v322 = vpop.f32.mrf.mxu0
    %v323 = vadd.f32 %v245, %v322
    %v324 = vpop.f32.mrf.mxu0
    %v325 = vadd.f32 %v249, %v324
    %326 = vdwg.mxu0
    %v327 = vmax.f32 %v323, 0.0
    %v328 = vmax.f32 %v325, 0.0
    %s329 = scalar_lea.vmem %s3, 320
    %v330 = vld [vmem:[%s329] sm:$0xff]
    %v331 = vld [vmem:[%s329 + $0x8] sm:$0xff]
    %v332 = vld [vmem:[%s329 + $0x10] sm:$0xff]
    %v333 = vld [vmem:[%s329 + $0x18] sm:$0xff]
    %v334 = vld [vmem:[%s329 + $0x20] sm:$0xff]
    %v335 = vld [vmem:[%s329 + $0x28] sm:$0xff]
    %v336 = vld [vmem:[%s329 + $0x30] sm:$0xff]
    %v337 = vld [vmem:[%s329 + $0x38] sm:$0xff]
    %v338 = vld [vmem:[%s329 + $0x40] sm:$0xff]
    %v339 = vld [vmem:[%s329 + $0x48] sm:$0xff]
    %v340 = vld [vmem:[%s329 + $0x50] sm:$0xff]
    %v341 = vld [vmem:[%s329 + $0x58] sm:$0xff]
    %v342 = vld [vmem:[%s329 + $0x60] sm:$0xff]
    %v343 = vld [vmem:[%s329 + $0x68] sm:$0xff]
    %v344 = vld [vmem:[%s329 + $0x70] sm:$0xff]
    %v345 = vld [vmem:[%s329 + $0x78] sm:$0xff]
    %v346 = vld [vmem:[%s329 + $0x80] sm:$0xff]
    %v347 = vld [vmem:[%s329 + $0x88] sm:$0xff]
    %v348 = vld [vmem:[%s329 + $0x90] sm:$0xff]
    %v349 = vld [vmem:[%s329 + $0x98] sm:$0xff]
    %v350 = vld [vmem:[%s329 + $0xa0] sm:$0xff]
    %v351 = vld [vmem:[%s329 + $0xa8] sm:$0xff]
    %v352 = vld [vmem:[%s329 + $0xb0] sm:$0xff]
    %v353 = vld [vmem:[%s329 + $0xb8] sm:$0xff]
    %v354 = vld [vmem:[%s329 + $0xc0] sm:$0xff]
    %v355 = vld [vmem:[%s329 + $0xc8] sm:$0xff]
    %v356 = vld [vmem:[%s329 + $0xd0] sm:$0xff]
    %v357 = vld [vmem:[%s329 + $0xd8] sm:$0xff]
    %v358 = vld [vmem:[%s329 + $0xe0] sm:$0xff]
    %v359 = vld [vmem:[%s329 + $0xe8] sm:$0xff]
    %v360 = vld [vmem:[%s329 + $0xf0] sm:$0xff]
    %v361 = vld [vmem:[%s329 + $0xf8] sm:$0xff]
    %v362 = vld [vmem:[%s329 + $0x100] sm:$0xff]
    %v363 = vld [vmem:[%s329 + $0x108] sm:$0xff]
    %v364 = vld [vmem:[%s329 + $0x110] sm:$0xff]
    %v365 = vld [vmem:[%s329 + $0x118] sm:$0xff]
    %v366 = vld [vmem:[%s329 + $0x120] sm:$0xff]
    %v367 = vld [vmem:[%s329 + $0x128] sm:$0xff]
    %v368 = vld [vmem:[%s329 + $0x130] sm:$0xff]
    %v369 = vld [vmem:[%s329 + $0x138] sm:$0xff]
    %s370 = scalar_lea.vmem %s4, 2
    %v371 = vld [vmem:[%s370] sm:$0x3]
    %v373 = vlaneseq
    %v374 = vshrl.u32 %v373, 7
    %v375 = vsub.s32 0, %v374
    %v376 = vrot.slane %v371, %v375
    %v377 = vlaneseq
    %v378 = vshrl.u32 %v377, 7
    %v379 = vsub.s32 1, %v378
    %v380 = vrot.slane %v371, %v379
    %v384 = vsel %vm252, %v328, 0
    %386 = vmatprep.subr.mxu0 %v361
    %387 = vmatpush1.msra.mxu0 %v360
    %388 = vmatprep.subr.mxu0 %v359
    %389 = vmatpush1.msra.mxu0 %v358
    %390 = vmatprep.subr.mxu0 %v357
    %391 = vmatpush1.msra.mxu0 %v356
    %392 = vmatprep.subr.mxu0 %v355
    %393 = vmatpush1.msra.mxu0 %v354
    %394 = vmatprep.subr.mxu0 %v353
    %395 = vmatpush1.msra.mxu0 %v352
    %396 = vmatprep.subr.mxu0 %v351
    %397 = vmatpush1.msra.mxu0 %v350
    %398 = vmatprep.subr.mxu0 %v349
    %399 = vmatpush1.msra.mxu0 %v348
    %400 = vmatprep.subr.mxu0 %v347
    %401 = vmatpush1.msra.mxu0 %v346
    %402 = vmatprep.subr.mxu0 %v345
    %403 = vmatpush1.msra.mxu0 %v344
    %404 = vmatprep.subr.mxu0 %v343
    %405 = vmatpush1.msra.mxu0 %v342
    %406 = vmatprep.subr.mxu0 %v341
    %407 = vmatpush1.msra.mxu0 %v340
    %408 = vmatprep.subr.mxu0 %v339
    %409 = vmatpush1.msra.mxu0 %v338
    %410 = vmatprep.subr.mxu0 %v337
    %411 = vmatpush1.msra.mxu0 %v336
    %412 = vmatprep.subr.mxu0 %v335
    %413 = vmatpush1.msra.mxu0 %v334
    %414 = vmatprep.subr.mxu0 %v333
    %415 = vmatpush1.msra.mxu0 %v332
    %416 = vmatprep.subr.mxu0 %v331
    %417 = vmatpush1.msra.mxu0 %v330
    %418 = vmatprep.subr.mxu0 0.0
    %419 = vmatpush2.msra.mxu0 0.0
    %420 = vmatprep.subr.mxu0 0.0
    %421 = vmatpush2.msra.mxu0 0.0
    %422 = vmatprep.subr.mxu0 0.0
    %423 = vmatpush2.msra.mxu0 0.0
    %424 = vmatprep.subr.mxu0 0.0
    %425 = vmatpush2.msra.mxu0 0.0
    %426 = vmatprep.subr.mxu0 0.0
    %427 = vmatpush2.msra.mxu0 0.0
    %428 = vmatprep.subr.mxu0 0.0
    %429 = vmatpush2.msra.mxu0 0.0
    %430 = vmatprep.subr.mxu0 0.0
    %431 = vmatpush2.msra.mxu0 0.0
    %432 = vmatprep.subr.mxu0 0.0
    %433 = vmatpush2.msra.mxu0 0.0
    %434 = vmatprep.subr.mxu0 0.0
    %435 = vmatpush2.msra.mxu0 0.0
    %436 = vmatprep.subr.mxu0 0.0
    %437 = vmatpush2.msra.mxu0 0.0
    %438 = vmatprep.subr.mxu0 0.0
    %439 = vmatpush2.msra.mxu0 0.0
    %440 = vmatprep.subr.mxu0 0.0
    %441 = vmatpush2.msra.mxu0 0.0
    %442 = vmatprep.subr.mxu0 %v369
    %443 = vmatpush2.msra.mxu0 %v368
    %444 = vmatprep.subr.mxu0 %v367
    %445 = vmatpush2.msra.mxu0 %v366
    %446 = vmatprep.subr.mxu0 %v365
    %447 = vmatpush2.msra.mxu0 %v364
    %448 = vmatprep.subr.mxu0 %v363
    %449 = vmatpush2.msra.mxu0 %v362
    %450 = vmatprep.mubr.f32.mxu0 %v384
    %451 = vmatmul.mubr.f32.gmra.mxu0 %v327
    %v452 = vpop.f32.mrf.mxu0
    %v453 = vadd.f32 %v376, %v452
    %v454 = vpop.f32.mrf.mxu0
    %v455 = vadd.f32 %v380, %v454
    %456 = vdwg.mxu0
    %v457 = vmax.f32 %v453, 0.0
    %v458 = vmax.f32 %v455, 0.0
    %v459 = vadd.f32 %v198, %v457
    %v460 = vadd.f32 %v199, %v458
    %s461 = scalar_lea.vmem %s3, 640
    %v462 = vld [vmem:[%s461] sm:$0xff]
    %v463 = vld [vmem:[%s461 + $0x8] sm:$0xff]
    %v464 = vld [vmem:[%s461 + $0x10] sm:$0xff]
    %v465 = vld [vmem:[%s461 + $0x18] sm:$0xff]
    %v466 = vld [vmem:[%s461 + $0x20] sm:$0xff]
    %v467 = vld [vmem:[%s461 + $0x28] sm:$0xff]
    %v468 = vld [vmem:[%s461 + $0x30] sm:$0xff]
    %v469 = vld [vmem:[%s461 + $0x38] sm:$0xff]
    %v470 = vld [vmem:[%s461 + $0x40] sm:$0xff]
    %v471 = vld [vmem:[%s461 + $0x48] sm:$0xff]
    %v472 = vld [vmem:[%s461 + $0x50] sm:$0xff]
    %v473 = vld [vmem:[%s461 + $0x58] sm:$0xff]
    %v474 = vld [vmem:[%s461 + $0x60] sm:$0xff]
    %v475 = vld [vmem:[%s461 + $0x68] sm:$0xff]
    %v476 = vld [vmem:[%s461 + $0x70] sm:$0xff]
    %v477 = vld [vmem:[%s461 + $0x78] sm:$0xff]
    %v478 = vld [vmem:[%s461 + $0x80] sm:$0xff]
    %v479 = vld [vmem:[%s461 + $0x88] sm:$0xff]
    %v480 = vld [vmem:[%s461 + $0x90] sm:$0xff]
    %v481 = vld [vmem:[%s461 + $0x98] sm:$0xff]
    %v482 = vld [vmem:[%s461 + $0xa0] sm:$0xff]
    %v483 = vld [vmem:[%s461 + $0xa8] sm:$0xff]
    %v484 = vld [vmem:[%s461 + $0xb0] sm:$0xff]
    %v485 = vld [vmem:[%s461 + $0xb8] sm:$0xff]
    %v486 = vld [vmem:[%s461 + $0xc0] sm:$0xff]
    %v487 = vld [vmem:[%s461 + $0xc8] sm:$0xff]
    %v488 = vld [vmem:[%s461 + $0xd0] sm:$0xff]
    %v489 = vld [vmem:[%s461 + $0xd8] sm:$0xff]
    %v490 = vld [vmem:[%s461 + $0xe0] sm:$0xff]
    %v491 = vld [vmem:[%s461 + $0xe8] sm:$0xff]
    %v492 = vld [vmem:[%s461 + $0xf0] sm:$0xff]
    %v493 = vld [vmem:[%s461 + $0xf8] sm:$0xff]
    %v494 = vld [vmem:[%s461 + $0x100] sm:$0xff]
    %v495 = vld [vmem:[%s461 + $0x108] sm:$0xff]
    %v496 = vld [vmem:[%s461 + $0x110] sm:$0xff]
    %v497 = vld [vmem:[%s461 + $0x118] sm:$0xff]
    %v498 = vld [vmem:[%s461 + $0x120] sm:$0xff]
    %v499 = vld [vmem:[%s461 + $0x128] sm:$0xff]
    %v500 = vld [vmem:[%s461 + $0x130] sm:$0xff]
    %v501 = vld [vmem:[%s461 + $0x138] sm:$0xff]
    %s502 = scalar_lea.vmem %s4, 4
    %v503 = vld [vmem:[%s502] sm:$0x3]
    %v505 = vlaneseq
    %v506 = vshrl.u32 %v505, 7
    %v507 = vsub.s32 0, %v506
    %v508 = vrot.slane %v503, %v507
    %v509 = vlaneseq
    %v510 = vshrl.u32 %v509, 7
    %v511 = vsub.s32 1, %v510
    %v512 = vrot.slane %v503, %v511
    %v516 = vsel %vm252, %v460, 0
    %518 = vmatprep.subr.mxu0 %v493
    %519 = vmatpush1.msra.mxu0 %v492
    %520 = vmatprep.subr.mxu0 %v491
    %521 = vmatpush1.msra.mxu0 %v490
    %522 = vmatprep.subr.mxu0 %v489
    %523 = vmatpush1.msra.mxu0 %v488
    %524 = vmatprep.subr.mxu0 %v487
    %525 = vmatpush1.msra.mxu0 %v486
    %526 = vmatprep.subr.mxu0 %v485
    %527 = vmatpush1.msra.mxu0 %v484
    %528 = vmatprep.subr.mxu0 %v483
    %529 = vmatpush1.msra.mxu0 %v482
    %530 = vmatprep.subr.mxu0 %v481
    %531 = vmatpush1.msra.mxu0 %v480
    %532 = vmatprep.subr.mxu0 %v479
    %533 = vmatpush1.msra.mxu0 %v478
    %534 = vmatprep.subr.mxu0 %v477
    %535 = vmatpush1.msra.mxu0 %v476
    %536 = vmatprep.subr.mxu0 %v475
    %537 = vmatpush1.msra.mxu0 %v474
    %538 = vmatprep.subr.mxu0 %v473
    %539 = vmatpush1.msra.mxu0 %v472
    %540 = vmatprep.subr.mxu0 %v471
    %541 = vmatpush1.msra.mxu0 %v470
    %542 = vmatprep.subr.mxu0 %v469
    %543 = vmatpush1.msra.mxu0 %v468
    %544 = vmatprep.subr.mxu0 %v467
    %545 = vmatpush1.msra.mxu0 %v466
    %546 = vmatprep.subr.mxu0 %v465
    %547 = vmatpush1.msra.mxu0 %v464
    %548 = vmatprep.subr.mxu0 %v463
    %549 = vmatpush1.msra.mxu0 %v462
    %550 = vmatprep.subr.mxu0 0.0
    %551 = vmatpush2.msra.mxu0 0.0
    %552 = vmatprep.subr.mxu0 0.0
    %553 = vmatpush2.msra.mxu0 0.0
    %554 = vmatprep.subr.mxu0 0.0
    %555 = vmatpush2.msra.mxu0 0.0
    %556 = vmatprep.subr.mxu0 0.0
    %557 = vmatpush2.msra.mxu0 0.0
    %558 = vmatprep.subr.mxu0 0.0
    %559 = vmatpush2.msra.mxu0 0.0
    %560 = vmatprep.subr.mxu0 0.0
    %561 = vmatpush2.msra.mxu0 0.0
    %562 = vmatprep.subr.mxu0 0.0
    %563 = vmatpush2.msra.mxu0 0.0
    %564 = vmatprep.subr.mxu0 0.0
    %565 = vmatpush2.msra.mxu0 0.0
    %566 = vmatprep.subr.mxu0 0.0
    %567 = vmatpush2.msra.mxu0 0.0
    %568 = vmatprep.subr.mxu0 0.0
    %569 = vmatpush2.msra.mxu0 0.0
    %570 = vmatprep.subr.mxu0 0.0
    %571 = vmatpush2.msra.mxu0 0.0
    %572 = vmatprep.subr.mxu0 0.0
    %573 = vmatpush2.msra.mxu0 0.0
    %574 = vmatprep.subr.mxu0 %v501
    %575 = vmatpush2.msra.mxu0 %v500
    %576 = vmatprep.subr.mxu0 %v499
    %577 = vmatpush2.msra.mxu0 %v498
    %578 = vmatprep.subr.mxu0 %v497
    %579 = vmatpush2.msra.mxu0 %v496
    %580 = vmatprep.subr.mxu0 %v495
    %581 = vmatpush2.msra.mxu0 %v494
    %582 = vmatprep.mubr.f32.mxu0 %v516
    %583 = vmatmul.mubr.f32.gmra.mxu0 %v459
    %v584 = vpop.f32.mrf.mxu0
    %v585 = vadd.f32 %v508, %v584
    %v586 = vpop.f32.mrf.mxu0
    %v587 = vadd.f32 %v512, %v586
    %588 = vdwg.mxu0
    %v589 = vmax.f32 %v585, 0.0
    %v590 = vmax.f32 %v587, 0.0
    %s591 = scalar_lea.vmem %s3, 960
    %v592 = vld [vmem:[%s591] sm:$0xff]
    %v593 = vld [vmem:[%s591 + $0x8] sm:$0xff]
    %v594 = vld [vmem:[%s591 + $0x10] sm:$0xff]
    %v595 = vld [vmem:[%s591 + $0x18] sm:$0xff]
    %v596 = vld [vmem:[%s591 + $0x20] sm:$0xff]
    %v597 = vld [vmem:[%s591 + $0x28] sm:$0xff]
    %v598 = vld [vmem:[%s591 + $0x30] sm:$0xff]
    %v599 = vld [vmem:[%s591 + $0x38] sm:$0xff]
    %v600 = vld [vmem:[%s591 + $0x40] sm:$0xff]
    %v601 = vld [vmem:[%s591 + $0x48] sm:$0xff]
    %v602 = vld [vmem:[%s591 + $0x50] sm:$0xff]
    %v603 = vld [vmem:[%s591 + $0x58] sm:$0xff]
    %v604 = vld [vmem:[%s591 + $0x60] sm:$0xff]
    %v605 = vld [vmem:[%s591 + $0x68] sm:$0xff]
    %v606 = vld [vmem:[%s591 + $0x70] sm:$0xff]
    %v607 = vld [vmem:[%s591 + $0x78] sm:$0xff]
    %v608 = vld [vmem:[%s591 + $0x80] sm:$0xff]
    %v609 = vld [vmem:[%s591 + $0x88] sm:$0xff]
    %v610 = vld [vmem:[%s591 + $0x90] sm:$0xff]
    %v611 = vld [vmem:[%s591 + $0x98] sm:$0xff]
    %v612 = vld [vmem:[%s591 + $0xa0] sm:$0xff]
    %v613 = vld [vmem:[%s591 + $0xa8] sm:$0xff]
    %v614 = vld [vmem:[%s591 + $0xb0] sm:$0xff]
    %v615 = vld [vmem:[%s591 + $0xb8] sm:$0xff]
    %v616 = vld [vmem:[%s591 + $0xc0] sm:$0xff]
    %v617 = vld [vmem:[%s591 + $0xc8] sm:$0xff]
    %v618 = vld [vmem:[%s591 + $0xd0] sm:$0xff]
    %v619 = vld [vmem:[%s591 + $0xd8] sm:$0xff]
    %v620 = vld [vmem:[%s591 + $0xe0] sm:$0xff]
    %v621 = vld [vmem:[%s591 + $0xe8] sm:$0xff]
    %v622 = vld [vmem:[%s591 + $0xf0] sm:$0xff]
    %v623 = vld [vmem:[%s591 + $0xf8] sm:$0xff]
    %v624 = vld [vmem:[%s591 + $0x100] sm:$0xff]
    %v625 = vld [vmem:[%s591 + $0x108] sm:$0xff]
    %v626 = vld [vmem:[%s591 + $0x110] sm:$0xff]
    %v627 = vld [vmem:[%s591 + $0x118] sm:$0xff]
    %v628 = vld [vmem:[%s591 + $0x120] sm:$0xff]
    %v629 = vld [vmem:[%s591 + $0x128] sm:$0xff]
    %v630 = vld [vmem:[%s591 + $0x130] sm:$0xff]
    %v631 = vld [vmem:[%s591 + $0x138] sm:$0xff]
    %s632 = scalar_lea.vmem %s4, 6
    %v633 = vld [vmem:[%s632] sm:$0x3]
    %v635 = vlaneseq
    %v636 = vshrl.u32 %v635, 7
    %v637 = vsub.s32 0, %v636
    %v638 = vrot.slane %v633, %v637
    %v639 = vlaneseq
    %v640 = vshrl.u32 %v639, 7
    %v641 = vsub.s32 1, %v640
    %v642 = vrot.slane %v633, %v641
    %v646 = vsel %vm252, %v590, 0
    %648 = vmatprep.subr.mxu0 %v623
    %649 = vmatpush1.msra.mxu0 %v622
    %650 = vmatprep.subr.mxu0 %v621
    %651 = vmatpush1.msra.mxu0 %v620
    %652 = vmatprep.subr.mxu0 %v619
    %653 = vmatpush1.msra.mxu0 %v618
    %654 = vmatprep.subr.mxu0 %v617
    %655 = vmatpush1.msra.mxu0 %v616
    %656 = vmatprep.subr.mxu0 %v615
    %657 = vmatpush1.msra.mxu0 %v614
    %658 = vmatprep.subr.mxu0 %v613
    %659 = vmatpush1.msra.mxu0 %v612
    %660 = vmatprep.subr.mxu0 %v611
    %661 = vmatpush1.msra.mxu0 %v610
    %662 = vmatprep.subr.mxu0 %v609
    %663 = vmatpush1.msra.mxu0 %v608
    %664 = vmatprep.subr.mxu0 %v607
    %665 = vmatpush1.msra.mxu0 %v606
    %666 = vmatprep.subr.mxu0 %v605
    %667 = vmatpush1.msra.mxu0 %v604
    %668 = vmatprep.subr.mxu0 %v603
    %669 = vmatpush1.msra.mxu0 %v602
    %670 = vmatprep.subr.mxu0 %v601
    %671 = vmatpush1.msra.mxu0 %v600
    %672 = vmatprep.subr.mxu0 %v599
    %673 = vmatpush1.msra.mxu0 %v598
    %674 = vmatprep.subr.mxu0 %v597
    %675 = vmatpush1.msra.mxu0 %v596
    %676 = vmatprep.subr.mxu0 %v595
    %677 = vmatpush1.msra.mxu0 %v594
    %678 = vmatprep.subr.mxu0 %v593
    %679 = vmatpush1.msra.mxu0 %v592
    %680 = vmatprep.subr.mxu0 0.0
    %681 = vmatpush2.msra.mxu0 0.0
    %682 = vmatprep.subr.mxu0 0.0
    %683 = vmatpush2.msra.mxu0 0.0
    %684 = vmatprep.subr.mxu0 0.0
    %685 = vmatpush2.msra.mxu0 0.0
    %686 = vmatprep.subr.mxu0 0.0
    %687 = vmatpush2.msra.mxu0 0.0
    %688 = vmatprep.subr.mxu0 0.0
    %689 = vmatpush2.msra.mxu0 0.0
    %690 = vmatprep.subr.mxu0 0.0
    %691 = vmatpush2.msra.mxu0 0.0
    %692 = vmatprep.subr.mxu0 0.0
    %693 = vmatpush2.msra.mxu0 0.0
    %694 = vmatprep.subr.mxu0 0.0
    %695 = vmatpush2.msra.mxu0 0.0
    %696 = vmatprep.subr.mxu0 0.0
    %697 = vmatpush2.msra.mxu0 0.0
    %698 = vmatprep.subr.mxu0 0.0
    %699 = vmatpush2.msra.mxu0 0.0
    %700 = vmatprep.subr.mxu0 0.0
    %701 = vmatpush2.msra.mxu0 0.0
    %702 = vmatprep.subr.mxu0 0.0
    %703 = vmatpush2.msra.mxu0 0.0
    %704 = vmatprep.subr.mxu0 %v631
    %705 = vmatpush2.msra.mxu0 %v630
    %706 = vmatprep.subr.mxu0 %v629
    %707 = vmatpush2.msra.mxu0 %v628
    %708 = vmatprep.subr.mxu0 %v627
    %709 = vmatpush2.msra.mxu0 %v626
    %710 = vmatprep.subr.mxu0 %v625
    %711 = vmatpush2.msra.mxu0 %v624
    %712 = vmatprep.mubr.f32.mxu0 %v646
    %713 = vmatmul.mubr.f32.gmra.mxu0 %v589
    %v714 = vpop.f32.mrf.mxu0
    %v715 = vadd.f32 %v638, %v714
    %v716 = vpop.f32.mrf.mxu0
    %v717 = vadd.f32 %v642, %v716
    %718 = vdwg.mxu0
    %v719 = vmax.f32 %v715, 0.0
    %v720 = vmax.f32 %v717, 0.0
    %v721 = vadd.f32 %v459, %v719
    %v722 = vadd.f32 %v460, %v720
    %v723 = vld [vmem:[#allocation4] sm:$0xff]
    %v724 = vld [vmem:[#allocation4 + $0x8] sm:$0xff]
    %v725 = vld [vmem:[#allocation4 + $0x10] sm:$0xff]
    %v726 = vld [vmem:[#allocation4 + $0x18] sm:$0xff]
    %v727 = vld [vmem:[#allocation4 + $0x20] sm:$0xff]
    %v728 = vld [vmem:[#allocation4 + $0x28] sm:$0xff]
    %v729 = vld [vmem:[#allocation4 + $0x30] sm:$0xff]
    %v730 = vld [vmem:[#allocation4 + $0x38] sm:$0xff]
    %v731 = vld [vmem:[#allocation4 + $0x40] sm:$0xff]
    %v732 = vld [vmem:[#allocation4 + $0x48] sm:$0xff]
    %v733 = vld [vmem:[#allocation4 + $0x50] sm:$0xff]
    %v734 = vld [vmem:[#allocation4 + $0x58] sm:$0xff]
    %v735 = vld [vmem:[#allocation4 + $0x60] sm:$0xff]
    %v736 = vld [vmem:[#allocation4 + $0x68] sm:$0xff]
    %v737 = vld [vmem:[#allocation4 + $0x70] sm:$0xff]
    %v738 = vld [vmem:[#allocation4 + $0x78] sm:$0xff]
    %v739 = vld [vmem:[#allocation4 + $0x80] sm:$0xff]
    %v740 = vld [vmem:[#allocation4 + $0x88] sm:$0xff]
    %v741 = vld [vmem:[#allocation4 + $0x90] sm:$0xff]
    %v742 = vld [vmem:[#allocation4 + $0x98] sm:$0xff]
    %v743 = vld [vmem:[%s6] sm:$0x1]
    %v745 = vlaneseq
    %v746 = vshrl.u32 %v745, 7
    %v747 = vsub.s32 0, %v746
    %v748 = vrot.slane %v743, %v747
    %v751 = vsel %vm252, %v722, 0
    %753 = vmatprep.subr.mxu0 0.0
    %754 = vmatpush1.msra.mxu0 %v738
    %755 = vmatprep.subr.mxu0 0.0
    %756 = vmatpush1.msra.mxu0 %v737
    %757 = vmatprep.subr.mxu0 0.0
    %758 = vmatpush1.msra.mxu0 %v736
    %759 = vmatprep.subr.mxu0 0.0
    %760 = vmatpush1.msra.mxu0 %v735
    %761 = vmatprep.subr.mxu0 0.0
    %762 = vmatpush1.msra.mxu0 %v734
    %763 = vmatprep.subr.mxu0 0.0
    %764 = vmatpush1.msra.mxu0 %v733
    %765 = vmatprep.subr.mxu0 0.0
    %766 = vmatpush1.msra.mxu0 %v732
    %767 = vmatprep.subr.mxu0 0.0
    %768 = vmatpush1.msra.mxu0 %v731
    %769 = vmatprep.subr.mxu0 0.0
    %770 = vmatpush1.msra.mxu0 %v730
    %771 = vmatprep.subr.mxu0 0.0
    %772 = vmatpush1.msra.mxu0 %v729
    %773 = vmatprep.subr.mxu0 0.0
    %774 = vmatpush1.msra.mxu0 %v728
    %775 = vmatprep.subr.mxu0 0.0
    %776 = vmatpush1.msra.mxu0 %v727
    %777 = vmatprep.subr.mxu0 0.0
    %778 = vmatpush1.msra.mxu0 %v726
    %779 = vmatprep.subr.mxu0 0.0
    %780 = vmatpush1.msra.mxu0 %v725
    %781 = vmatprep.subr.mxu0 0.0
    %782 = vmatpush1.msra.mxu0 %v724
    %783 = vmatprep.subr.mxu0 0.0
    %784 = vmatpush1.msra.mxu0 %v723
    %785 = vmatprep.subr.mxu0 0.0
    %786 = vmatpush2.msra.mxu0 0.0
    %787 = vmatprep.subr.mxu0 0.0
    %788 = vmatpush2.msra.mxu0 0.0
    %789 = vmatprep.subr.mxu0 0.0
    %790 = vmatpush2.msra.mxu0 0.0
    %791 = vmatprep.subr.mxu0 0.0
    %792 = vmatpush2.msra.mxu0 0.0
    %793 = vmatprep.subr.mxu0 0.0
    %794 = vmatpush2.msra.mxu0 0.0
    %795 = vmatprep.subr.mxu0 0.0
    %796 = vmatpush2.msra.mxu0 0.0
    %797 = vmatprep.subr.mxu0 0.0
    %798 = vmatpush2.msra.mxu0 0.0
    %799 = vmatprep.subr.mxu0 0.0
    %800 = vmatpush2.msra.mxu0 0.0
    %801 = vmatprep.subr.mxu0 0.0
    %802 = vmatpush2.msra.mxu0 0.0
    %803 = vmatprep.subr.mxu0 0.0
    %804 = vmatpush2.msra.mxu0 0.0
    %805 = vmatprep.subr.mxu0 0.0
    %806 = vmatpush2.msra.mxu0 0.0
    %807 = vmatprep.subr.mxu0 0.0
    %808 = vmatpush2.msra.mxu0 0.0
    %809 = vmatprep.subr.mxu0 0.0
    %810 = vmatpush2.msra.mxu0 %v742
    %811 = vmatprep.subr.mxu0 0.0
    %812 = vmatpush2.msra.mxu0 %v741
    %813 = vmatprep.subr.mxu0 0.0
    %814 = vmatpush2.msra.mxu0 %v740
    %815 = vmatprep.subr.mxu0 0.0
    %816 = vmatpush2.msra.mxu0 %v739
    %817 = vmatprep.mubr.f32.mxu0 %v751
    %818 = vmatmul.mubr.f32.gmra.mxu0 %v721
    %v819 = vpop.f32.mrf.mxu0
    %v820 = vadd.f32 %v748, %v819
    %v821 = vpop.f32.mrf.mxu0
    %822 = vdwg.mxu0
    %v823 = vmax.f32 %v820, 0.0
    %v824 = vld [vmem:[%s7] sm:$0xff]
    %v825 = vld [vmem:[%s7 + $0x8] sm:$0xff]
    %v826 = vld [vmem:[%s7 + $0x10] sm:$0xff]
    %v827 = vld [vmem:[%s7 + $0x18] sm:$0xff]
    %v828 = vld [vmem:[%s8] sm:$0x1]
    %v830 = vlaneseq
    %v831 = vshrl.u32 %v830, 7
    %v832 = vsub.s32 0, %v831
    %v833 = vrot.slane %v828, %v832
    %v836 = vsel %vm252, %v823, 0
    %838 = vmatprep.subr.mxu0 0.0
    %839 = vmatpush1.msra.mxu0 0.0
    %840 = vmatprep.subr.mxu0 0.0
    %841 = vmatpush1.msra.mxu0 0.0
    %842 = vmatprep.subr.mxu0 0.0
    %843 = vmatpush1.msra.mxu0 0.0
    %844 = vmatprep.subr.mxu0 0.0
    %845 = vmatpush1.msra.mxu0 0.0
    %846 = vmatprep.subr.mxu0 0.0
    %847 = vmatpush1.msra.mxu0 0.0
    %848 = vmatprep.subr.mxu0 0.0
    %849 = vmatpush1.msra.mxu0 0.0
    %850 = vmatprep.subr.mxu0 0.0
    %851 = vmatpush1.msra.mxu0 0.0
    %852 = vmatprep.subr.mxu0 0.0
    %853 = vmatpush1.msra.mxu0 0.0
    %854 = vmatprep.subr.mxu0 0.0
    %855 = vmatpush1.msra.mxu0 0.0
    %856 = vmatprep.subr.mxu0 0.0
    %857 = vmatpush1.msra.mxu0 0.0
    %858 = vmatprep.subr.mxu0 0.0
    %859 = vmatpush1.msra.mxu0 0.0
    %860 = vmatprep.subr.mxu0 0.0
    %861 = vmatpush1.msra.mxu0 0.0
    %862 = vmatprep.subr.mxu0 0.0
    %863 = vmatpush1.msra.mxu0 %v827
    %864 = vmatprep.subr.mxu0 0.0
    %865 = vmatpush1.msra.mxu0 %v826
    %866 = vmatprep.subr.mxu0 0.0
    %867 = vmatpush1.msra.mxu0 %v825
    %868 = vmatprep.subr.mxu0 0.0
    %869 = vmatpush1.msra.mxu0 %v824
    %870 = vmatprep.subr.mxu0 0.0
    %871 = vmatpush2.msra.mxu0 0.0
    %872 = vmatprep.subr.mxu0 0.0
    %873 = vmatpush2.msra.mxu0 0.0
    %874 = vmatprep.subr.mxu0 0.0
    %875 = vmatpush2.msra.mxu0 0.0
    %876 = vmatprep.subr.mxu0 0.0
    %877 = vmatpush2.msra.mxu0 0.0
    %878 = vmatprep.subr.mxu0 0.0
    %879 = vmatpush2.msra.mxu0 0.0
    %880 = vmatprep.subr.mxu0 0.0
    %881 = vmatpush2.msra.mxu0 0.0
    %882 = vmatprep.subr.mxu0 0.0
    %883 = vmatpush2.msra.mxu0 0.0
    %884 = vmatprep.subr.mxu0 0.0
    %885 = vmatpush2.msra.mxu0 0.0
    %886 = vmatprep.subr.mxu0 0.0
    %887 = vmatpush2.msra.mxu0 0.0
    %888 = vmatprep.subr.mxu0 0.0
    %889 = vmatpush2.msra.mxu0 0.0
    %890 = vmatprep.subr.mxu0 0.0
    %891 = vmatpush2.msra.mxu0 0.0
    %892 = vmatprep.subr.mxu0 0.0
    %893 = vmatpush2.msra.mxu0 0.0
    %894 = vmatprep.subr.mxu0 0.0
    %895 = vmatpush2.msra.mxu0 0.0
    %896 = vmatprep.subr.mxu0 0.0
    %897 = vmatpush2.msra.mxu0 0.0
    %898 = vmatprep.subr.mxu0 0.0
    %899 = vmatpush2.msra.mxu0 0.0
    %900 = vmatprep.subr.mxu0 0.0
    %901 = vmatpush2.msra.mxu0 0.0
    %902 = vmatprep.mubr.f32.mxu0 0.0
    %903 = vmatmul.mubr.f32.gmra.mxu0 %v836
    %v904 = vpop.f32.mrf.mxu0
    %v905 = vadd.f32 %v833, %v904
    %v906 = vpop.f32.mrf.mxu0
    %907 = vdwg.mxu0
    %908 = vst [vmem:[%s9] sm:$0xff] %v905
    // Predicated region
    $region46: #{run.1} parent=1 // pred_check
      _
    $region47: #{run.1} parent=1 // pred_check_branch
      %910 = sbr.rel (0) target = $region49
    $region48: #{run.1} parent=1 // pred_region
      _
    $region49: #{run.1} parent=1 // pred_fallthru
      _
    // Predicated region
    $region50: #{run.1} parent=1 // pred_check
      _
    $region51: #{run.1} parent=1 // pred_check_branch
      %912 = sbr.rel (0) target = $region53
    $region52: #{run.1} parent=1 // pred_region
      _
    $region53: #{run.1} parent=1 // pred_fallthru
      _
    %913 = vsyncpa [#allocation3], 1
    %914 = vsyncpa [#allocation5], 1

</llo_original>
